<compile_context>
chip_gen: v7x
topology: tpu7x:2x2x1
jax: 0.10.0
libtpu: 0.0.40
codegen_flags: <defaults>
</compile_context>

<pallas_src>
import functools

import numpy as np
import jax
import jax.numpy as jnp
from jax.experimental import pallas as pl
from jax.experimental.pallas import tpu as pltpu

# --- model hyper-params (small, consistent with the module) -----------------
D_MODEL = 32          # d_model
NHEAD = 4             # nhead
HEAD_DIM = D_MODEL // NHEAD
SEQ = 8               # number of queries (L)
BATCH = 2             # batch (N)
LN_EPS = 1e-5
NEG_INF = -1e30       # large negative for masked score entries (exp -> 0 in f32)


def _self_attn_layer_kernel(x_ref, pos_ref, w_ref, misc_ref, out_ref,
                            *, nhead, head_dim, ln_eps):
    """Whole layer in one shot: MHSA (all batches + heads) + residual + LayerNorm.

    Row layout: row r corresponds to (query l = r // N, batch n = r % N), i.e. the free
    row-major reshape of the (L, N, E) PyTorch layout.  Batch separation is enforced by a
    precomputed additive mask on the score matrix.
    """
    R, E = x_ref.shape
    H, Dh = nhead, head_dim
    HR = H * R

    x = x_ref[...].astype(jnp.float32)                   # (R, E)
    qk_in = x + pos_ref[...].astype(jnp.float32)         # (R, E)

    w = w_ref[...]                                       # (E, 4E): [Wq*s | Wk | Wv | Wo]
    misc = misc_ref[...]                                 # (HR+8, E+R)
    head_mask = misc[:HR, :E]                            # (HR, E)  1 iff col belongs to row's head
    score_bias = misc[:HR, E:E + R]                      # (HR, R)  0 / -1e30 batch-separation mask
    vecs = misc[HR:HR + 6, :E]                           # rows: b_q*s, b_k, b_v, b_o, gamma, beta
    b_q, b_k, b_v, b_o = vecs[0:1], vecs[1:2], vecs[2:3], vecs[3:4]
    gamma, beta = vecs[4:5], vecs[5:6]

    # --- QKV projections: two lane-dense 2-D matmuls (scale already folded into W_q/b_q) ---
    qk2d = jnp.dot(qk_in, w[:, :2 * E], preferred_element_type=jnp.float32)   # (R, 2E)
    q2d = qk2d[:, :E] + b_q                                                    # (R, E)
    k2d = qk2d[:, E:] + b_k                                                    # (R, E)
    v2d = jnp.dot(x, w[:, 2 * E:3 * E], preferred_element_type=jnp.float32) + b_v  # (R, E)

    # --- all-head scores with ONE matmul -----------------------------------------------
    # Tile q vertically H times and zero every column that is not the row-block's head;
    # then (HR,E) @ (R,E)^T gives per-head scores stacked along rows (block-diagonal trick).
    q_exp = jnp.broadcast_to(q2d, (H, R, E)).reshape(HR, E) * head_mask        # (HR, E)
    s = jnp.einsum('xe,se->xs', q_exp, k2d, preferred_element_type=jnp.float32)  # (HR, R)
    s = s + score_bias

    # softmax over keys (masked entries underflow to exactly 0)
    s = s - jnp.max(s, axis=-1, keepdims=True)
    p = jnp.exp(s)
    p = p * pl.reciprocal(jnp.sum(p, axis=-1, keepdims=True), approx=True)     # EUP reciprocal

    # --- attend for all heads with ONE matmul, keep each head's own column block --------
    o_full = jnp.dot(p, v2d, preferred_element_type=jnp.float32)               # (HR, E)
    o2d = jnp.sum((o_full * head_mask).reshape(H, R, E), axis=0)               # (R, E) concat-heads

    # --- output projection (head reduction implicit) + residual + LayerNorm -------------
    attn = jnp.dot(o2d, w[:, 3 * E:], preferred_element_type=jnp.float32) + b_o
    y = x + attn
    mean = jnp.mean(y, axis=-1, keepdims=True)
    var = jnp.mean((y - mean) ** 2, axis=-1, keepdims=True)
    y = (y - mean) * jax.lax.rsqrt(var + ln_eps)
    out_ref[...] = (y * gamma + beta).astype(out_ref.dtype)


@jax.jit
def self_attention_layer(tgt, query_pos, w_slab, misc_slab):
    """tgt, query_pos: (L, N, E) float32 — same convention as the PyTorch module."""
    L, N, E = tgt.shape
    # Free row-major reshape (no transpose): row r = (l = r // N, n = r % N).
    x2 = tgt.reshape(L * N, E)
    p2 = query_pos.reshape(L * N, E)

    kernel = functools.partial(_self_attn_layer_kernel,
                               nhead=NHEAD, head_dim=HEAD_DIM, ln_eps=LN_EPS)
    vmem = pl.BlockSpec(memory_space=pltpu.MemorySpace.VMEM)
    out2 = pl.pallas_call(
        kernel,
        out_shape=jax.ShapeDtypeStruct((L * N, E), tgt.dtype),
        in_specs=[vmem] * 4,
        out_specs=vmem,
    )(x2, p2, w_slab, misc_slab)

    return out2.reshape(L, N, E)               # back to (L, N, E), free reshape


def init_params(key, d_model):
    """Deterministic synthetic weights mirroring the module's __init__/resetparameters:
       xavier_uniform on matrices, zeros on biases, LayerNorm weight=1 / bias=0."""
    k1, k2 = jax.random.split(key)
    bound_in = (6.0 / (3 * d_model + d_model)) ** 0.5
    in_proj_w = jax.random.uniform(k1, (3 * d_model, d_model),
                                   minval=-bound_in, maxval=bound_in, dtype=jnp.float32)
    bound_out = (6.0 / (2 * d_model)) ** 0.5
    out_proj_w = jax.random.uniform(k2, (d_model, d_model),
                                    minval=-bound_out, maxval=bound_out, dtype=jnp.float32)
    wq, wk, wv = jnp.split(in_proj_w, 3, axis=0)
    zeros_b = jnp.zeros((1, d_model), jnp.float32)
    return {
        # pre-transposed so y = x @ W^T is x @ W_t
        "wq_t": wq.T, "wk_t": wk.T, "wv_t": wv.T, "wo_t": out_proj_w.T,
        "bq": zeros_b, "bk": zeros_b, "bv": zeros_b, "bo": zeros_b,
        "gamma": jnp.ones((1, d_model), jnp.float32),
        "beta": jnp.zeros((1, d_model), jnp.float32),
    }


def pack_params(p, seq_len, batch):
    """One-time host-side repack into the two lane-dense slabs the kernel consumes."""
    E, H, Dh = D_MODEL, NHEAD, HEAD_DIM
    R = seq_len * batch
    scale = 1.0 / float(Dh) ** 0.5

    # Weight slab (E, 4E) = (32, 128): [W_q*scale | W_k | W_v | W_o] (pre-transposed, y = x @ W).
    w_slab = jnp.concatenate([p["wq_t"] * scale, p["wk_t"], p["wv_t"], p["wo_t"]], axis=1)

    # head_mask[h*R + r, e] = 1 iff column e belongs to head h.
    x_idx = np.arange(H * R)
    head_mask = (x_idx[:, None] // R == np.arange(E)[None, :] // Dh).astype(np.float32)
    # score_bias[h*R + r, s] = 0 if rows r and s are the same batch element, else -1e30.
    r_idx = x_idx % R
    score_bias = np.where((r_idx[:, None] % batch) == (np.arange(R)[None, :] % batch),
                          0.0, NEG_INF).astype(np.float32)
    top = jnp.asarray(np.concatenate([head_mask, score_bias], axis=1))        # (H*R, E+R)

    vec_rows = jnp.concatenate([p["bq"] * scale, p["bk"], p["bv"], p["bo"],
                                p["gamma"], p["beta"],
                                jnp.zeros((2, E), jnp.float32)], axis=0)       # (8, E)
    bottom = jnp.concatenate([vec_rows, jnp.zeros((8, R), jnp.float32)], axis=1)  # (8, E+R)
    misc_slab = jnp.concatenate([top, bottom], axis=0)                         # (H*R+8, E+R)
    return w_slab, misc_slab


def reference(tgt, query_pos, params):
    """Pure-JAX reference of forwardpost (correctness cross-check)."""
    L, N, E = tgt.shape
    qk = tgt + query_pos
    q = qk @ params["wq_t"] + params["bq"]
    k = qk @ params["wk_t"] + params["bk"]
    v = tgt @ params["wv_t"] + params["bv"]

    def split_heads(x):                        # (L, N, E) -> (N, H, L, Dh)
        return jnp.transpose(x.reshape(L, N, NHEAD, HEAD_DIM), (1, 2, 0, 3))

    qh, kh, vh = split_heads(q), split_heads(k), split_heads(v)
    s = jnp.einsum("nhld,nhmd->nhlm", qh, kh) / (HEAD_DIM ** 0.5)
    p = jax.nn.softmax(s, axis=-1)
    o = jnp.einsum("nhlm,nhmd->nhld", p, vh)
    o = jnp.transpose(o, (2, 0, 1, 3)).reshape(L, N, E)
    o = o @ params["wo_t"] + params["bo"]
    y = tgt + o
    mean = jnp.mean(y, axis=-1, keepdims=True)
    var = jnp.mean((y - mean) ** 2, axis=-1, keepdims=True)
    return (y - mean) * jax.lax.rsqrt(var + LN_EPS) * params["gamma"] + params["beta"]


if __name__ == "__main__":
    key = jax.random.PRNGKey(0)
    k_tgt, k_pos, k_par = jax.random.split(key, 3)

    tgt = jax.random.normal(k_tgt, (SEQ, BATCH, D_MODEL), dtype=jnp.float32)
    query_pos = jax.random.normal(k_pos, (SEQ, BATCH, D_MODEL), dtype=jnp.float32)
    params = init_params(k_par, D_MODEL)
    w_slab, misc_slab = pack_params(params, SEQ, BATCH)

    out = self_attention_layer(tgt, query_pos, w_slab, misc_slab)
    out = jax.block_until_ready(out)

    ref = reference(tgt, query_pos, params)
    assert out.shape == (SEQ, BATCH, D_MODEL)
    # Tolerance slightly widened vs 1e-4: the softmax denominator uses the EUP approximate
    # reciprocal (pl.reciprocal(approx=True)); everything else is exact f32.
    assert jnp.allclose(out, ref, atol=2e-3, rtol=2e-3), "mismatch vs pure-JAX reference"

    print("KERNEL_OK")
</pallas_src>

<mosaic_0001>
module attributes {stable_mosaic.version = 11 : i64} {
  func.func @_self_attn_layer_kernel(%arg0: memref<16x32xf32, #tpu.memory_space<vmem>>, %arg1: memref<16x32xf32, #tpu.memory_space<vmem>>, %arg2: memref<32x128xf32, #tpu.memory_space<vmem>>, %arg3: memref<72x48xf32, #tpu.memory_space<vmem>>, %arg4: memref<16x32xf32, #tpu.memory_space<vmem>>) attributes {dimension_semantics = [], scalar_prefetch = 0 : i64, scratch_operands = 0 : i64, tpu.core_type = #tpu.core_type<tc>} {
    %c0 = arith.constant 0 : index
    %c0_0 = arith.constant 0 : index
    %0 = vector.load %arg0[%c0, %c0_0] : memref<16x32xf32, #tpu.memory_space<vmem>>, vector<16x32xf32>
    %c0_1 = arith.constant 0 : index
    %c0_2 = arith.constant 0 : index
    %1 = vector.load %arg1[%c0_1, %c0_2] : memref<16x32xf32, #tpu.memory_space<vmem>>, vector<16x32xf32>
    %2 = arith.addf %0, %1 : vector<16x32xf32>
    %c0_3 = arith.constant 0 : index
    %c0_4 = arith.constant 0 : index
    %3 = vector.load %arg2[%c0_3, %c0_4] : memref<32x128xf32, #tpu.memory_space<vmem>>, vector<32x128xf32>
    %c0_5 = arith.constant 0 : index
    %c0_6 = arith.constant 0 : index
    %4 = vector.load %arg3[%c0_5, %c0_6] : memref<72x48xf32, #tpu.memory_space<vmem>>, vector<72x48xf32>
    %5 = vector.extract_strided_slice %4 {offsets = [0, 0], sizes = [64, 32], strides = [1, 1]} : vector<72x48xf32> to vector<64x32xf32>
    %6 = vector.extract_strided_slice %4 {offsets = [0, 32], sizes = [64, 16], strides = [1, 1]} : vector<72x48xf32> to vector<64x16xf32>
    %7 = vector.extract_strided_slice %4 {offsets = [64, 0], sizes = [6, 32], strides = [1, 1]} : vector<72x48xf32> to vector<6x32xf32>
    %8 = vector.extract_strided_slice %7 {offsets = [0, 0], sizes = [1, 32], strides = [1, 1]} : vector<6x32xf32> to vector<1x32xf32>
    %9 = vector.extract_strided_slice %7 {offsets = [1, 0], sizes = [1, 32], strides = [1, 1]} : vector<6x32xf32> to vector<1x32xf32>
    %10 = vector.extract_strided_slice %7 {offsets = [2, 0], sizes = [1, 32], strides = [1, 1]} : vector<6x32xf32> to vector<1x32xf32>
    %11 = vector.extract_strided_slice %7 {offsets = [3, 0], sizes = [1, 32], strides = [1, 1]} : vector<6x32xf32> to vector<1x32xf32>
    %12 = vector.extract_strided_slice %7 {offsets = [4, 0], sizes = [1, 32], strides = [1, 1]} : vector<6x32xf32> to vector<1x32xf32>
    %13 = vector.extract_strided_slice %7 {offsets = [5, 0], sizes = [1, 32], strides = [1, 1]} : vector<6x32xf32> to vector<1x32xf32>
    %14 = vector.extract_strided_slice %3 {offsets = [0, 0], sizes = [32, 64], strides = [1, 1]} : vector<32x128xf32> to vector<32x64xf32>
    %cst = arith.constant dense<0.000000e+00> : vector<16x64xf32>
    %15 = tpu.matmul %2, %14, %cst {dimension_numbers = #tpu.dot_dimension_numbers<[1], [0], [0], [1], [0, 0, 1, 1], [], []>} : vector<16x32xf32>, vector<32x64xf32>, vector<16x64xf32> -> vector<16x64xf32>
    %16 = vector.extract_strided_slice %15 {offsets = [0, 0], sizes = [16, 32], strides = [1, 1]} : vector<16x64xf32> to vector<16x32xf32>
    %17 = vector.broadcast %8 : vector<1x32xf32> to vector<16x32xf32>
    %18 = arith.addf %16, %17 : vector<16x32xf32>
    %19 = vector.extract_strided_slice %15 {offsets = [0, 32], sizes = [16, 32], strides = [1, 1]} : vector<16x64xf32> to vector<16x32xf32>
    %20 = vector.broadcast %9 : vector<1x32xf32> to vector<16x32xf32>
    %21 = arith.addf %19, %20 : vector<16x32xf32>
    %22 = vector.extract_strided_slice %3 {offsets = [0, 64], sizes = [32, 32], strides = [1, 1]} : vector<32x128xf32> to vector<32x32xf32>
    %cst_7 = arith.constant dense<0.000000e+00> : vector<16x32xf32>
    %23 = tpu.matmul %0, %22, %cst_7 {dimension_numbers = #tpu.dot_dimension_numbers<[1], [0], [0], [1], [0, 0, 1, 1], [], []>} : vector<16x32xf32>, vector<32x32xf32>, vector<16x32xf32> -> vector<16x32xf32>
    %24 = vector.broadcast %10 : vector<1x32xf32> to vector<16x32xf32>
    %25 = arith.addf %23, %24 : vector<16x32xf32>
    %26 = vector.shape_cast %18 : vector<16x32xf32> to vector<1x16x32xf32>
    %27 = vector.broadcast %26 : vector<1x16x32xf32> to vector<4x16x32xf32>
    %28 = vector.shape_cast %27 : vector<4x16x32xf32> to vector<64x32xf32>
    %29 = arith.mulf %28, %5 : vector<64x32xf32>
    "tpu.trace_start"() <{level = 10 : i32, message = "xe,se->xs"}> : () -> ()
    %cst_8 = arith.constant dense<0.000000e+00> : vector<64x16xf32>
    %30 = tpu.matmul %29, %21, %cst_8 {dimension_numbers = #tpu.dot_dimension_numbers<[1], [1], [0], [0], [0, 0, 1, 0], [], []>} : vector<64x32xf32>, vector<16x32xf32>, vector<64x16xf32> -> vector<64x16xf32>
    "tpu.trace_stop"() : () -> ()
    %31 = arith.addf %30, %6 : vector<64x16xf32>
    %cst_9 = arith.constant dense<0xFF800000> : vector<64xf32>
    %32 = vector.multi_reduction <maximumf>, %31, %cst_9 [1] : vector<64x16xf32> to vector<64xf32>
    %33 = vector.shape_cast %32 : vector<64xf32> to vector<64x1xf32>
    %34 = vector.broadcast %33 : vector<64x1xf32> to vector<64x16xf32>
    %35 = arith.subf %31, %34 : vector<64x16xf32>
    %36 = math.exp %35 : vector<64x16xf32>
    %cst_10 = arith.constant dense<0.000000e+00> : vector<64xf32>
    %37 = vector.multi_reduction <add>, %36, %cst_10 [1] : vector<64x16xf32> to vector<64xf32>
    %38 = vector.shape_cast %37 : vector<64xf32> to vector<64x1xf32>
    %39 = tpu.reciprocal %38 {approx = true} : vector<64x1xf32> -> vector<64x1xf32>
    %40 = vector.broadcast %39 : vector<64x1xf32> to vector<64x16xf32>
    %41 = arith.mulf %36, %40 : vector<64x16xf32>
    %cst_11 = arith.constant dense<0.000000e+00> : vector<64x32xf32>
    %42 = tpu.matmul %41, %25, %cst_11 {dimension_numbers = #tpu.dot_dimension_numbers<[1], [0], [0], [1], [0, 0, 1, 1], [], []>} : vector<64x16xf32>, vector<16x32xf32>, vector<64x32xf32> -> vector<64x32xf32>
    %43 = arith.mulf %42, %5 : vector<64x32xf32>
    %44 = vector.shape_cast %43 : vector<64x32xf32> to vector<4x16x32xf32>
    %cst_12 = arith.constant dense<0.000000e+00> : vector<16x32xf32>
    %45 = vector.multi_reduction <add>, %44, %cst_12 [0] : vector<4x16x32xf32> to vector<16x32xf32>
    %46 = vector.extract_strided_slice %3 {offsets = [0, 96], sizes = [32, 32], strides = [1, 1]} : vector<32x128xf32> to vector<32x32xf32>
    %cst_13 = arith.constant dense<0.000000e+00> : vector<16x32xf32>
    %47 = tpu.matmul %45, %46, %cst_13 {dimension_numbers = #tpu.dot_dimension_numbers<[1], [0], [0], [1], [0, 0, 1, 1], [], []>} : vector<16x32xf32>, vector<32x32xf32>, vector<16x32xf32> -> vector<16x32xf32>
    %48 = vector.broadcast %11 : vector<1x32xf32> to vector<16x32xf32>
    %49 = arith.addf %47, %48 : vector<16x32xf32>
    %50 = arith.addf %0, %49 : vector<16x32xf32>
    %cst_14 = arith.constant dense<0.000000e+00> : vector<16xf32>
    %51 = vector.multi_reduction <add>, %50, %cst_14 [1] : vector<16x32xf32> to vector<16xf32>
    %52 = vector.shape_cast %51 : vector<16xf32> to vector<16x1xf32>
    %cst_15 = arith.constant 3.200000e+01 : f32
    %53 = vector.broadcast %cst_15 : f32 to vector<16x1xf32>
    %54 = arith.divf %52, %53 : vector<16x1xf32>
    %55 = vector.broadcast %54 : vector<16x1xf32> to vector<16x32xf32>
    %56 = arith.subf %50, %55 : vector<16x32xf32>
    %57 = arith.mulf %56, %56 : vector<16x32xf32>
    %cst_16 = arith.constant dense<0.000000e+00> : vector<16xf32>
    %58 = vector.multi_reduction <add>, %57, %cst_16 [1] : vector<16x32xf32> to vector<16xf32>
    %59 = vector.shape_cast %58 : vector<16xf32> to vector<16x1xf32>
    %cst_17 = arith.constant 3.200000e+01 : f32
    %60 = vector.broadcast %cst_17 : f32 to vector<16x1xf32>
    %61 = arith.divf %59, %60 : vector<16x1xf32>
    %62 = vector.broadcast %54 : vector<16x1xf32> to vector<16x32xf32>
    %63 = arith.subf %50, %62 : vector<16x32xf32>
    %cst_18 = arith.constant 9.99999974E-6 : f32
    %64 = vector.broadcast %cst_18 : f32 to vector<16x1xf32>
    %65 = arith.addf %61, %64 : vector<16x1xf32>
    %66 = math.rsqrt %65 : vector<16x1xf32>
    %67 = vector.broadcast %66 : vector<16x1xf32> to vector<16x32xf32>
    %68 = arith.mulf %63, %67 : vector<16x32xf32>
    %69 = vector.broadcast %12 : vector<1x32xf32> to vector<16x32xf32>
    %70 = arith.mulf %68, %69 : vector<16x32xf32>
    %71 = vector.broadcast %13 : vector<1x32xf32> to vector<16x32xf32>
    %72 = arith.addf %70, %71 : vector<16x32xf32>
    %c0_19 = arith.constant 0 : index
    %c0_20 = arith.constant 0 : index
    %73 = vector.load %arg4[%c0_19, %c0_20] : memref<16x32xf32, #tpu.memory_space<vmem>>, vector<16x32xf32>
    tpu.vector_store %arg4[%c0_19, %c0_20], %72 {strides = array<i32>} : memref<16x32xf32, #tpu.memory_space<vmem>>, vector<16x32xf32>,
    return
  }
}

</mosaic_0001>

<llo_original>
// kernel: self_attention_layer.1
$region0: #{self_attention_layer.1}
  #allocation0 [shape = 'u32[]', space=smem, size = 0x4, offset = 0x4, fixed_abs, tag = 'smem constant byte address 0x4 - core index']
  #allocation1 [shape = 'u32[144,128]{1,0:T(1,128)}', space=vmem, size = 0x12000, scoped, tag = 'internal scratch']
  %s0 = inlined_call_operand.vmem [shape: f32[16,32], index: 0, kind: input, shape index: {}]
  %s1 = inlined_call_operand.vmem [shape: f32[16,32], index: 1, kind: input, shape index: {}]
  %s2 = inlined_call_operand.vmem [shape: f32[32,128], index: 2, kind: input, shape index: {}]
  %s3 = inlined_call_operand.vmem [shape: f32[72,48], index: 3, kind: input, shape index: {}]
  %s4 = inlined_call_operand.hbm [shape: f32[16,32], index: 4, kind: output, shape index: {}]
  %s5 = sld [smem:[#allocation0]]
  $region26: #{self_attention_layer.1} parent=0
    _
  %s7 = ssub.s32 1, %s5
  %s8 = scalar_select 0, %s7, %s5
  $region1: #{self_attention_layer.1} parent=0
    #allocation2 [shape = 'u8[8192]{0}', space=vmem, size = 0x2000, scoped, tag = 'output window, operand 0, single buffered']
    #allocation3 [shape = 's32[1]{0}', space=sflag, size = 0x4, scoped, tag = 'scoped memory for self_attention_layer.1']
    %9 = vsyncpa [#allocation3], 0
    // Predicated region
    $region2: #{self_attention_layer.1} parent=1 // pred_check
      _
    $region3: #{self_attention_layer.1} parent=1 // pred_check_branch
      %11 = sbr.rel (0) target = $region5
    $region4: #{self_attention_layer.1} parent=1 // pred_region
      _
    $region5: #{self_attention_layer.1} parent=1 // pred_fallthru
      _
    // Predicated region
    $region6: #{self_attention_layer.1} parent=1 // pred_check
      _
    $region7: #{self_attention_layer.1} parent=1 // pred_check_branch
      %13 = sbr.rel (0) target = $region9
    $region8: #{self_attention_layer.1} parent=1 // pred_region
      _
    $region9: #{self_attention_layer.1} parent=1 // pred_fallthru
      _
    // Predicated region
    $region10: #{self_attention_layer.1} parent=1 // pred_check
      _
    $region11: #{self_attention_layer.1} parent=1 // pred_check_branch
      %15 = sbr.rel (0) target = $region13
    $region12: #{self_attention_layer.1} parent=1 // pred_region
      _
    $region13: #{self_attention_layer.1} parent=1 // pred_fallthru
      _
    // Predicated region
    $region14: #{self_attention_layer.1} parent=1 // pred_check
      _
    $region15: #{self_attention_layer.1} parent=1 // pred_check_branch
      %17 = sbr.rel (0) target = $region17
    $region16: #{self_attention_layer.1} parent=1 // pred_region
      _
    $region17: #{self_attention_layer.1} parent=1 // pred_fallthru
      _
    %v18 = vld [vmem:[%s0] sm:$0xff]
    %v19 = vld [vmem:[%s0 + $0x8] sm:$0xff]
    %v20 = vld [vmem:[%s1] sm:$0xff]
    %v21 = vld [vmem:[%s1 + $0x8] sm:$0xff]
    %v22 = vadd.f32 %v18, %v20
    %v23 = vadd.f32 %v19, %v21
    %v24 = vld [vmem:[%s2] sm:$0xff]
    %v25 = vld [vmem:[%s2 + $0x8] sm:$0xff]
    %v26 = vld [vmem:[%s2 + $0x10] sm:$0xff]
    %v27 = vld [vmem:[%s2 + $0x18] sm:$0xff]
    %v28 = vld [vmem:[%s3] sm:$0xff]
    %v29 = vld [vmem:[%s3 + $0x8] sm:$0xff]
    %v30 = vld [vmem:[%s3 + $0x10] sm:$0xff]
    %v31 = vld [vmem:[%s3 + $0x18] sm:$0xff]
    %v32 = vld [vmem:[%s3 + $0x20] sm:$0xff]
    %v33 = vld [vmem:[%s3 + $0x28] sm:$0xff]
    %v34 = vld [vmem:[%s3 + $0x30] sm:$0xff]
    %v35 = vld [vmem:[%s3 + $0x38] sm:$0xff]
    %v36 = vld [vmem:[%s3 + $0x40] sm:$0xff]
    %vm37 = vcmask 261120
    %v39 = vsel %vm37, %v22, 0
    %v42 = vsel %vm37, %v23, 0
    %44 = vmatprep.subr.mxu0 0.0
    %45 = vmatpush1.msra.mxu0 %v24
    %46 = vmatprep.subr.mxu0 0.0
    %47 = vmatpush1.msra.mxu0 %v25
    %48 = vmatprep.subr.mxu0 0.0
    %49 = vmatpush1.msra.mxu0 %v26
    %50 = vmatprep.subr.mxu0 0.0
    %51 = vmatpush1.msra.mxu0 %v27
    %52 = vmatprep.subr.mxu0 0.0
    %53 = vmatpush1.msra.mxu0 0.0
    %54 = vmatprep.subr.mxu0 0.0
    %55 = vmatpush1.msra.mxu0 0.0
    %56 = vmatprep.subr.mxu0 0.0
    %57 = vmatpush1.msra.mxu0 0.0
    %58 = vmatprep.subr.mxu0 0.0
    %59 = vmatpush1.msra.mxu0 0.0
    %60 = vmatprep.subr.mxu0 0.0
    %61 = vmatpush1.msra.mxu0 0.0
    %62 = vmatprep.subr.mxu0 0.0
    %63 = vmatpush1.msra.mxu0 0.0
    %64 = vmatprep.subr.mxu0 0.0
    %65 = vmatpush1.msra.mxu0 0.0
    %66 = vmatprep.subr.mxu0 0.0
    %67 = vmatpush1.msra.mxu0 0.0
    %68 = vmatprep.subr.mxu0 0.0
    %69 = vmatpush1.msra.mxu0 0.0
    %70 = vmatprep.subr.mxu0 0.0
    %71 = vmatpush1.msra.mxu0 0.0
    %72 = vmatprep.subr.mxu0 0.0
    %73 = vmatpush1.msra.mxu0 0.0
    %74 = vmatprep.subr.mxu0 0.0
    %75 = vmatpush1.msra.mxu0 0.0
    %76 = vmatprep.subr.mxu0 0.0
    %77 = vmatpush1.msra.mxu0 0.0
    %78 = vmatprep.subr.mxu0 0.0
    %79 = vmatpush1.msra.mxu0 0.0
    %80 = vmatprep.subr.mxu0 0.0
    %81 = vmatpush1.msra.mxu0 0.0
    %82 = vmatprep.subr.mxu0 0.0
    %83 = vmatpush1.msra.mxu0 0.0
    %84 = vmatprep.subr.mxu0 0.0
    %85 = vmatpush1.msra.mxu0 0.0
    %86 = vmatprep.subr.mxu0 0.0
    %87 = vmatpush1.msra.mxu0 0.0
    %88 = vmatprep.subr.mxu0 0.0
    %89 = vmatpush1.msra.mxu0 0.0
    %90 = vmatprep.subr.mxu0 0.0
    %91 = vmatpush1.msra.mxu0 0.0
    %92 = vmatprep.subr.mxu0 0.0
    %93 = vmatpush1.msra.mxu0 0.0
    %94 = vmatprep.subr.mxu0 0.0
    %95 = vmatpush1.msra.mxu0 0.0
    %96 = vmatprep.subr.mxu0 0.0
    %97 = vmatpush1.msra.mxu0 0.0
    %98 = vmatprep.subr.mxu0 0.0
    %99 = vmatpush1.msra.mxu0 0.0
    %100 = vmatprep.subr.mxu0 0.0
    %101 = vmatpush1.msra.mxu0 0.0
    %102 = vmatprep.subr.mxu0 0.0
    %103 = vmatpush1.msra.mxu0 0.0
    %104 = vmatprep.subr.mxu0 0.0
    %105 = vmatpush1.msra.mxu0 0.0
    %106 = vmatprep.subr.mxu0 0.0
    %107 = vmatpush1.msra.mxu0 0.0
    %108 = vmatprep.mubr.f32.mxu0 0.0
    %109 = vmatmul.mubr.f32.gmra.mrb[0].mxu0 %v39
    %v110 = vpop.f32.mrb[0].mxu0
    %v111 = vadd.f32 0.0, %v110
    %v112 = vpop.f32.mrb[0].mxu0
    %113 = vmatprep.mubr.f32.mxu0 0.0
    %114 = vmatmul.mubr.f32.gmra.mrb[0].mxu0 %v42
    %v115 = vpop.f32.mrb[0].mxu0
    %v116 = vadd.f32 0.0, %v115
    %v117 = vpop.f32.mrb[0].mxu0
    %118 = vdwg.mxu0
    %v119 = vlaneseq
    %v120 = vshrl.u32 %v119, 7
    %v121 = vsub.s32 0, %v120
    %v122 = vrot.slane %v36, %v121
    %v123 = vadd.f32 %v111, %v122
    %v124 = vadd.f32 %v116, %v122
    %v125 = vlaneseq
    %v126 = vshrl.u32 %v125, 7
    %v127 = vsub.s32 1, %v126
    %v128 = vrot.slane %v36, %v127
    %130 = vrot.lane.b32.xlu0 %v128, 32
    %v131 = vpop.permute.xlu0 %130
    %v133 = vadd.f32 %v111, %v131
    %v134 = vadd.f32 %v116, %v131
    %v135 = vlaneseq
    %v136 = vshrl.u32 %v135, 7
    %v137 = vsub.s32 2, %v136
    %v138 = vrot.slane %v36, %v137
    %143 = vrot.lane.b32.xlu0 %v24, 64
    %v144 = vpop.permute.xlu0 %143
    %145 = vrot.lane.b32.xlu0 %v25, 64
    %v146 = vpop.permute.xlu0 %145
    %147 = vrot.lane.b32.xlu0 %v26, 64
    %v148 = vpop.permute.xlu0 %147
    %149 = vrot.lane.b32.xlu0 %v27, 64
    %v150 = vpop.permute.xlu0 %149
    %v156 = vsel %vm37, %v18, 0
    %v159 = vsel %vm37, %v19, 0
    %161 = vmatprep.subr.mxu0 0.0
    %162 = vmatpush1.msra.mxu0 %v144
    %163 = vmatprep.subr.mxu0 0.0
    %164 = vmatpush1.msra.mxu0 %v146
    %165 = vmatprep.subr.mxu0 0.0
    %166 = vmatpush1.msra.mxu0 %v148
    %167 = vmatprep.subr.mxu0 0.0
    %168 = vmatpush1.msra.mxu0 %v150
    %169 = vmatprep.subr.mxu0 0.0
    %170 = vmatpush1.msra.mxu0 0.0
    %171 = vmatprep.subr.mxu0 0.0
    %172 = vmatpush1.msra.mxu0 0.0
    %173 = vmatprep.subr.mxu0 0.0
    %174 = vmatpush1.msra.mxu0 0.0
    %175 = vmatprep.subr.mxu0 0.0
    %176 = vmatpush1.msra.mxu0 0.0
    %177 = vmatprep.subr.mxu0 0.0
    %178 = vmatpush1.msra.mxu0 0.0
    %179 = vmatprep.subr.mxu0 0.0
    %180 = vmatpush1.msra.mxu0 0.0
    %181 = vmatprep.subr.mxu0 0.0
    %182 = vmatpush1.msra.mxu0 0.0
    %183 = vmatprep.subr.mxu0 0.0
    %184 = vmatpush1.msra.mxu0 0.0
    %185 = vmatprep.subr.mxu0 0.0
    %186 = vmatpush1.msra.mxu0 0.0
    %187 = vmatprep.subr.mxu0 0.0
    %188 = vmatpush1.msra.mxu0 0.0
    %189 = vmatprep.subr.mxu0 0.0
    %190 = vmatpush1.msra.mxu0 0.0
    %191 = vmatprep.subr.mxu0 0.0
    %192 = vmatpush1.msra.mxu0 0.0
    %193 = vmatprep.subr.mxu0 0.0
    %194 = vmatpush1.msra.mxu0 0.0
    %195 = vmatprep.subr.mxu0 0.0
    %196 = vmatpush1.msra.mxu0 0.0
    %197 = vmatprep.subr.mxu0 0.0
    %198 = vmatpush1.msra.mxu0 0.0
    %199 = vmatprep.subr.mxu0 0.0
    %200 = vmatpush1.msra.mxu0 0.0
    %201 = vmatprep.subr.mxu0 0.0
    %202 = vmatpush1.msra.mxu0 0.0
    %203 = vmatprep.subr.mxu0 0.0
    %204 = vmatpush1.msra.mxu0 0.0
    %205 = vmatprep.subr.mxu0 0.0
    %206 = vmatpush1.msra.mxu0 0.0
    %207 = vmatprep.subr.mxu0 0.0
    %208 = vmatpush1.msra.mxu0 0.0
    %209 = vmatprep.subr.mxu0 0.0
    %210 = vmatpush1.msra.mxu0 0.0
    %211 = vmatprep.subr.mxu0 0.0
    %212 = vmatpush1.msra.mxu0 0.0
    %213 = vmatprep.subr.mxu0 0.0
    %214 = vmatpush1.msra.mxu0 0.0
    %215 = vmatprep.subr.mxu0 0.0
    %216 = vmatpush1.msra.mxu0 0.0
    %217 = vmatprep.subr.mxu0 0.0
    %218 = vmatpush1.msra.mxu0 0.0
    %219 = vmatprep.subr.mxu0 0.0
    %220 = vmatpush1.msra.mxu0 0.0
    %221 = vmatprep.subr.mxu0 0.0
    %222 = vmatpush1.msra.mxu0 0.0
    %223 = vmatprep.subr.mxu0 0.0
    %224 = vmatpush1.msra.mxu0 0.0
    %225 = vmatprep.mubr.f32.mxu0 0.0
    %226 = vmatmul.mubr.f32.gmra.mrb[0].mxu0 %v156
    %v227 = vpop.f32.mrb[0].mxu0
    %v228 = vadd.f32 %v138, %v227
    %v229 = vpop.f32.mrb[0].mxu0
    %230 = vmatprep.mubr.f32.mxu0 0.0
    %231 = vmatmul.mubr.f32.gmra.mrb[0].mxu0 %v159
    %v232 = vpop.f32.mrb[0].mxu0
    %v233 = vadd.f32 %v138, %v232
    %v234 = vpop.f32.mrb[0].mxu0
    %235 = vdwg.mxu0
    %v236 = vmul.f32 %v123, %v28
    %v237 = vmul.f32 %v124, %v29
    %v238 = vmul.f32 %v123, %v30
    %v239 = vmul.f32 %v124, %v31
    %v240 = vmul.f32 %v123, %v32
    %v241 = vmul.f32 %v124, %v33
    %v242 = vmul.f32 %v123, %v34
    %v243 = vmul.f32 %v124, %v35
    %246 = vrot.lane.b32.xlu0 %v133, 96
    %v247 = vpop.permute.xlu0 %246
    %248 = vrot.lane.b32.xlu0 %v134, 96
    %v249 = vpop.permute.xlu0 %248
    %258 = vrot.lane.b32.xlu0 %v28, 96
    %v259 = vpop.permute.xlu0 %258
    %260 = vrot.lane.b32.xlu0 %v29, 96
    %v261 = vpop.permute.xlu0 %260
    %262 = vrot.lane.b32.xlu0 %v30, 96
    %v263 = vpop.permute.xlu0 %262
    %264 = vrot.lane.b32.xlu0 %v31, 96
    %v265 = vpop.permute.xlu0 %264
    %266 = vrot.lane.b32.xlu0 %v32, 96
    %v267 = vpop.permute.xlu0 %266
    %268 = vrot.lane.b32.xlu0 %v33, 96
    %v269 = vpop.permute.xlu0 %268
    %270 = vrot.lane.b32.xlu0 %v34, 96
    %v271 = vpop.permute.xlu0 %270
    %272 = vrot.lane.b32.xlu0 %v35, 96
    %v273 = vpop.permute.xlu0 %272
    %v283 = vsel %vm37, %v236, 0
    %v286 = vsel %vm37, %v237, 0
    %v289 = vsel %vm37, %v238, 0
    %v292 = vsel %vm37, %v239, 0
    %v295 = vsel %vm37, %v240, 0
    %v298 = vsel %vm37, %v241, 0
    %v301 = vsel %vm37, %v242, 0
    %v304 = vsel %vm37, %v243, 0
    %v306 = vsel %vm37, %v247, 0
    %v308 = vsel %vm37, %v249, 0
    %310 = vmatprep.subr.mxu0 0.0
    %311 = vmatpush1.xpose.msra.mxu0 %v306
    %312 = vmatprep.subr.mxu0 0.0
    %313 = vmatpush1.xpose.msra.mxu0 %v308
    %314 = vmatprep.subr.mxu0 0.0
    %315 = vmatpush1.xpose.msra.mxu0 0.0
    %316 = vmatprep.subr.mxu0 0.0
    %317 = vmatpush1.xpose.msra.mxu0 0.0
    %318 = vmatprep.subr.mxu0 0.0
    %319 = vmatpush1.xpose.msra.mxu0 0.0
    %320 = vmatprep.subr.mxu0 0.0
    %321 = vmatpush1.xpose.msra.mxu0 0.0
    %322 = vmatprep.subr.mxu0 0.0
    %323 = vmatpush1.xpose.msra.mxu0 0.0
    %324 = vmatprep.subr.mxu0 0.0
    %325 = vmatpush1.xpose.msra.mxu0 0.0
    %326 = vmatprep.subr.mxu0 0.0
    %327 = vmatpush1.xpose.msra.mxu0 0.0
    %328 = vmatprep.subr.mxu0 0.0
    %329 = vmatpush1.xpose.msra.mxu0 0.0
    %330 = vmatprep.subr.mxu0 0.0
    %331 = vmatpush1.xpose.msra.mxu0 0.0
    %332 = vmatprep.subr.mxu0 0.0
    %333 = vmatpush1.xpose.msra.mxu0 0.0
    %334 = vmatprep.subr.mxu0 0.0
    %335 = vmatpush1.xpose.msra.mxu0 0.0
    %336 = vmatprep.subr.mxu0 0.0
    %337 = vmatpush1.xpose.msra.mxu0 0.0
    %338 = vmatprep.subr.mxu0 0.0
    %339 = vmatpush1.xpose.msra.mxu0 0.0
    %340 = vmatprep.subr.mxu0 0.0
    %341 = vmatpush1.xpose.msra.mxu0 0.0
    %342 = vmatprep.subr.mxu0 0.0
    %343 = vmatpush1.xpose.msra.mxu0 0.0
    %344 = vmatprep.subr.mxu0 0.0
    %345 = vmatpush1.xpose.msra.mxu0 0.0
    %346 = vmatprep.subr.mxu0 0.0
    %347 = vmatpush1.xpose.msra.mxu0 0.0
    %348 = vmatprep.subr.mxu0 0.0
    %349 = vmatpush1.xpose.msra.mxu0 0.0
    %350 = vmatprep.subr.mxu0 0.0
    %351 = vmatpush1.xpose.msra.mxu0 0.0
    %352 = vmatprep.subr.mxu0 0.0
    %353 = vmatpush1.xpose.msra.mxu0 0.0
    %354 = vmatprep.subr.mxu0 0.0
    %355 = vmatpush1.xpose.msra.mxu0 0.0
    %356 = vmatprep.subr.mxu0 0.0
    %357 = vmatpush1.xpose.msra.mxu0 0.0
    %358 = vmatprep.subr.mxu0 0.0
    %359 = vmatpush1.xpose.msra.mxu0 0.0
    %360 = vmatprep.subr.mxu0 0.0
    %361 = vmatpush1.xpose.msra.mxu0 0.0
    %362 = vmatprep.subr.mxu0 0.0
    %363 = vmatpush1.xpose.msra.mxu0 0.0
    %364 = vmatprep.subr.mxu0 0.0
    %365 = vmatpush1.xpose.msra.mxu0 0.0
    %366 = vmatprep.subr.mxu0 0.0
    %367 = vmatpush1.xpose.msra.mxu0 0.0
    %368 = vmatprep.subr.mxu0 0.0
    %369 = vmatpush1.xpose.msra.mxu0 0.0
    %370 = vmatprep.subr.mxu0 0.0
    %371 = vmatpush1.xpose.msra.mxu0 0.0
    %372 = vmatprep.subr.mxu0 0.0
    %373 = vmatpush1.xpose.msra.mxu0 0.0
    %374 = vmatprep.mubr.f32.mxu0 0.0
    %375 = vmatmul.mubr.f32.gmra.mrb[0].mxu0 %v283
    %v376 = vpop.f32.mrb[0].mxu0
    %v377 = vadd.f32 %v259, %v376
    %v378 = vpop.f32.mrb[0].mxu0
    %379 = vmatprep.mubr.f32.mxu0 0.0
    %380 = vmatmul.mubr.f32.gmra.mrb[0].mxu0 %v286
    %v381 = vpop.f32.mrb[0].mxu0
    %v382 = vadd.f32 %v261, %v381
    %v383 = vpop.f32.mrb[0].mxu0
    %384 = vmatprep.mubr.f32.mxu0 0.0
    %385 = vmatmul.mubr.f32.gmra.mrb[0].mxu0 %v289
    %v386 = vpop.f32.mrb[0].mxu0
    %v387 = vadd.f32 %v263, %v386
    %v388 = vpop.f32.mrb[0].mxu0
    %389 = vmatprep.mubr.f32.mxu0 0.0
    %390 = vmatmul.mubr.f32.gmra.mrb[0].mxu0 %v292
    %v391 = vpop.f32.mrb[0].mxu0
    %v392 = vadd.f32 %v265, %v391
    %v393 = vpop.f32.mrb[0].mxu0
    %394 = vmatprep.mubr.f32.mxu0 0.0
    %395 = vmatmul.mubr.f32.gmra.mrb[0].mxu0 %v295
    %v396 = vpop.f32.mrb[0].mxu0
    %v397 = vadd.f32 %v267, %v396
    %v398 = vpop.f32.mrb[0].mxu0
    %399 = vmatprep.mubr.f32.mxu0 0.0
    %400 = vmatmul.mubr.f32.gmra.mrb[0].mxu0 %v298
    %v401 = vpop.f32.mrb[0].mxu0
    %v402 = vadd.f32 %v269, %v401
    %v403 = vpop.f32.mrb[0].mxu0
    %404 = vmatprep.mubr.f32.mxu0 0.0
    %405 = vmatmul.mubr.f32.gmra.mrb[0].mxu0 %v301
    %v406 = vpop.f32.mrb[0].mxu0
    %v407 = vadd.f32 %v271, %v406
    %v408 = vpop.f32.mrb[0].mxu0
    %409 = vmatprep.mubr.f32.mxu0 0.0
    %410 = vmatmul.mubr.f32.gmra.mrb[0].mxu0 %v304
    %v411 = vpop.f32.mrb[0].mxu0
    %v412 = vadd.f32 %v273, %v411
    %v413 = vpop.f32.mrb[0].mxu0
    %414 = vdwg.mxu0
    %vm415 = vcmask 130048
    %v416 = vsel %vm415, %v377, -inf
    %417 = vmax.xlane.f32.xlu0 %v416
    %v418 = vpop.xlane.xlu0 %417
    %v419 = vsel %vm415, %v382, -inf
    %420 = vmax.xlane.f32.xlu0 %v419
    %v421 = vpop.xlane.xlu0 %420
    %v422 = vsel %vm415, %v387, -inf
    %423 = vmax.xlane.f32.xlu0 %v422
    %v424 = vpop.xlane.xlu0 %423
    %v425 = vsel %vm415, %v392, -inf
    %426 = vmax.xlane.f32.xlu0 %v425
    %v427 = vpop.xlane.xlu0 %426
    %v428 = vsel %vm415, %v397, -inf
    %429 = vmax.xlane.f32.xlu0 %v428
    %v430 = vpop.xlane.xlu0 %429
    %v431 = vsel %vm415, %v402, -inf
    %432 = vmax.xlane.f32.xlu0 %v431
    %v433 = vpop.xlane.xlu0 %432
    %v434 = vsel %vm415, %v407, -inf
    %435 = vmax.xlane.f32.xlu0 %v434
    %v436 = vpop.xlane.xlu0 %435
    %v437 = vsel %vm415, %v412, -inf
    %438 = vmax.xlane.f32.xlu0 %v437
    %v439 = vpop.xlane.xlu0 %438
    %v440 = vsub.f32 %v377, %v418
    %v441 = vsub.f32 %v382, %v421
    %v442 = vsub.f32 %v387, %v424
    %v443 = vsub.f32 %v392, %v427
    %v444 = vsub.f32 %v397, %v430
    %v445 = vsub.f32 %v402, %v433
    %v446 = vsub.f32 %v407, %v436
    %v447 = vsub.f32 %v412, %v439
    %v448 = vmul.f32 %v440, 1.442695
    %v449 = vpow.pop %v448
    %v450 = vmul.f32 %v441, 1.442695
    %v451 = vpow.pop %v450
    %v452 = vmul.f32 %v442, 1.442695
    %v453 = vpow.pop %v452
    %v454 = vmul.f32 %v443, 1.442695
    %v455 = vpow.pop %v454
    %v456 = vmul.f32 %v444, 1.442695
    %v457 = vpow.pop %v456
    %v458 = vmul.f32 %v445, 1.442695
    %v459 = vpow.pop %v458
    %v460 = vmul.f32 %v446, 1.442695
    %v461 = vpow.pop %v460
    %v462 = vmul.f32 %v447, 1.442695
    %v463 = vpow.pop %v462
    %v464 = vsel %vm415, %v449, 0.0
    %465 = vadd.xlane.f32.xlu0 %v464
    %v466 = vpop.xlane.xlu0 %465
    %v467 = vsel %vm415, %v451, 0.0
    %468 = vadd.xlane.f32.xlu0 %v467
    %v469 = vpop.xlane.xlu0 %468
    %v470 = vsel %vm415, %v453, 0.0
    %471 = vadd.xlane.f32.xlu0 %v470
    %v472 = vpop.xlane.xlu0 %471
    %v473 = vsel %vm415, %v455, 0.0
    %474 = vadd.xlane.f32.xlu0 %v473
    %v475 = vpop.xlane.xlu0 %474
    %v476 = vsel %vm415, %v457, 0.0
    %477 = vadd.xlane.f32.xlu0 %v476
    %v478 = vpop.xlane.xlu0 %477
    %v479 = vsel %vm415, %v459, 0.0
    %480 = vadd.xlane.f32.xlu0 %v479
    %v481 = vpop.xlane.xlu0 %480
    %v482 = vsel %vm415, %v461, 0.0
    %483 = vadd.xlane.f32.xlu0 %v482
    %v484 = vpop.xlane.xlu0 %483
    %v485 = vsel %vm415, %v463, 0.0
    %486 = vadd.xlane.f32.xlu0 %v485
    %v487 = vpop.xlane.xlu0 %486
    %v488 = vrcp.pop %v466
    %v489 = vrcp.pop %v469
    %v490 = vrcp.pop %v472
    %v491 = vrcp.pop %v475
    %v492 = vrcp.pop %v478
    %v493 = vrcp.pop %v481
    %v494 = vrcp.pop %v484
    %v495 = vrcp.pop %v487
    %v496 = vmul.f32 %v449, %v488
    %v497 = vmul.f32 %v451, %v489
    %v498 = vmul.f32 %v453, %v490
    %v499 = vmul.f32 %v455, %v491
    %v500 = vmul.f32 %v457, %v492
    %v501 = vmul.f32 %v459, %v493
    %v502 = vmul.f32 %v461, %v494
    %v503 = vmul.f32 %v463, %v495
    %v505 = vsel %vm415, %v496, 0
    %v508 = vsel %vm415, %v497, 0
    %v511 = vsel %vm415, %v498, 0
    %v514 = vsel %vm415, %v499, 0
    %v517 = vsel %vm415, %v500, 0
    %v520 = vsel %vm415, %v501, 0
    %v523 = vsel %vm415, %v502, 0
    %v526 = vsel %vm415, %v503, 0
    %528 = vmatprep.subr.mxu0 0.0
    %529 = vmatpush1.msra.mxu0 %v228
    %530 = vmatprep.subr.mxu0 0.0
    %531 = vmatpush1.msra.mxu0 %v233
    %532 = vmatprep.subr.mxu0 0.0
    %533 = vmatpush1.msra.mxu0 0.0
    %534 = vmatprep.subr.mxu0 0.0
    %535 = vmatpush1.msra.mxu0 0.0
    %536 = vmatprep.subr.mxu0 0.0
    %537 = vmatpush1.msra.mxu0 0.0
    %538 = vmatprep.subr.mxu0 0.0
    %539 = vmatpush1.msra.mxu0 0.0
    %540 = vmatprep.subr.mxu0 0.0
    %541 = vmatpush1.msra.mxu0 0.0
    %542 = vmatprep.subr.mxu0 0.0
    %543 = vmatpush1.msra.mxu0 0.0
    %544 = vmatprep.subr.mxu0 0.0
    %545 = vmatpush1.msra.mxu0 0.0
    %546 = vmatprep.subr.mxu0 0.0
    %547 = vmatpush1.msra.mxu0 0.0
    %548 = vmatprep.subr.mxu0 0.0
    %549 = vmatpush1.msra.mxu0 0.0
    %550 = vmatprep.subr.mxu0 0.0
    %551 = vmatpush1.msra.mxu0 0.0
    %552 = vmatprep.subr.mxu0 0.0
    %553 = vmatpush1.msra.mxu0 0.0
    %554 = vmatprep.subr.mxu0 0.0
    %555 = vmatpush1.msra.mxu0 0.0
    %556 = vmatprep.subr.mxu0 0.0
    %557 = vmatpush1.msra.mxu0 0.0
    %558 = vmatprep.subr.mxu0 0.0
    %559 = vmatpush1.msra.mxu0 0.0
    %560 = vmatprep.subr.mxu0 0.0
    %561 = vmatpush1.msra.mxu0 0.0
    %562 = vmatprep.subr.mxu0 0.0
    %563 = vmatpush1.msra.mxu0 0.0
    %564 = vmatprep.subr.mxu0 0.0
    %565 = vmatpush1.msra.mxu0 0.0
    %566 = vmatprep.subr.mxu0 0.0
    %567 = vmatpush1.msra.mxu0 0.0
    %568 = vmatprep.subr.mxu0 0.0
    %569 = vmatpush1.msra.mxu0 0.0
    %570 = vmatprep.subr.mxu0 0.0
    %571 = vmatpush1.msra.mxu0 0.0
    %572 = vmatprep.subr.mxu0 0.0
    %573 = vmatpush1.msra.mxu0 0.0
    %574 = vmatprep.subr.mxu0 0.0
    %575 = vmatpush1.msra.mxu0 0.0
    %576 = vmatprep.subr.mxu0 0.0
    %577 = vmatpush1.msra.mxu0 0.0
    %578 = vmatprep.subr.mxu0 0.0
    %579 = vmatpush1.msra.mxu0 0.0
    %580 = vmatprep.subr.mxu0 0.0
    %581 = vmatpush1.msra.mxu0 0.0
    %582 = vmatprep.subr.mxu0 0.0
    %583 = vmatpush1.msra.mxu0 0.0
    %584 = vmatprep.subr.mxu0 0.0
    %585 = vmatpush1.msra.mxu0 0.0
    %586 = vmatprep.subr.mxu0 0.0
    %587 = vmatpush1.msra.mxu0 0.0
    %588 = vmatprep.subr.mxu0 0.0
    %589 = vmatpush1.msra.mxu0 0.0
    %590 = vmatprep.subr.mxu0 0.0
    %591 = vmatpush1.msra.mxu0 0.0
    %592 = vmatprep.mubr.f32.mxu0 0.0
    %593 = vmatmul.mubr.f32.gmra.mrb[0].mxu0 %v505
    %v594 = vpop.f32.mrb[0].mxu0
    %v595 = vadd.f32 0.0, %v594
    %v596 = vpop.f32.mrb[0].mxu0
    %597 = vmatprep.mubr.f32.mxu0 0.0
    %598 = vmatmul.mubr.f32.gmra.mrb[0].mxu0 %v508
    %v599 = vpop.f32.mrb[0].mxu0
    %v600 = vadd.f32 0.0, %v599
    %v601 = vpop.f32.mrb[0].mxu0
    %602 = vmatprep.mubr.f32.mxu0 0.0
    %603 = vmatmul.mubr.f32.gmra.mrb[0].mxu0 %v511
    %v604 = vpop.f32.mrb[0].mxu0
    %v605 = vadd.f32 0.0, %v604
    %v606 = vpop.f32.mrb[0].mxu0
    %607 = vmatprep.mubr.f32.mxu0 0.0
    %608 = vmatmul.mubr.f32.gmra.mrb[0].mxu0 %v514
    %v609 = vpop.f32.mrb[0].mxu0
    %v610 = vadd.f32 0.0, %v609
    %v611 = vpop.f32.mrb[0].mxu0
    %612 = vmatprep.mubr.f32.mxu0 0.0
    %613 = vmatmul.mubr.f32.gmra.mrb[0].mxu0 %v517
    %v614 = vpop.f32.mrb[0].mxu0
    %v615 = vadd.f32 0.0, %v614
    %v616 = vpop.f32.mrb[0].mxu0
    %617 = vmatprep.mubr.f32.mxu0 0.0
    %618 = vmatmul.mubr.f32.gmra.mrb[0].mxu0 %v520
    %v619 = vpop.f32.mrb[0].mxu0
    %v620 = vadd.f32 0.0, %v619
    %v621 = vpop.f32.mrb[0].mxu0
    %622 = vmatprep.mubr.f32.mxu0 0.0
    %623 = vmatmul.mubr.f32.gmra.mrb[0].mxu0 %v523
    %v624 = vpop.f32.mrb[0].mxu0
    %v625 = vadd.f32 0.0, %v624
    %v626 = vpop.f32.mrb[0].mxu0
    %627 = vmatprep.mubr.f32.mxu0 0.0
    %628 = vmatmul.mubr.f32.gmra.mrb[0].mxu0 %v526
    %v629 = vpop.f32.mrb[0].mxu0
    %v630 = vadd.f32 0.0, %v629
    %v631 = vpop.f32.mrb[0].mxu0
    %632 = vdwg.mxu0
    %v633 = vmul.f32 %v595, %v28
    %v634 = vmul.f32 %v600, %v29
    %v635 = vmul.f32 %v605, %v30
    %v636 = vmul.f32 %v610, %v31
    %v637 = vmul.f32 %v615, %v32
    %v638 = vmul.f32 %v620, %v33
    %v639 = vmul.f32 %v625, %v34
    %v640 = vmul.f32 %v630, %v35
    %v641 = vsel %vm37, %v633, 0.0
    %v642 = vsel %vm37, %v635, 0.0
    %v643 = vadd.f32 %v641, %v642
    %v644 = vsel %vm37, %v637, 0.0
    %v645 = vadd.f32 %v643, %v644
    %v646 = vsel %vm37, %v639, 0.0
    %v647 = vadd.f32 %v645, %v646
    %v648 = vsel %vm37, %v634, 0.0
    %v649 = vsel %vm37, %v636, 0.0
    %v650 = vadd.f32 %v648, %v649
    %v651 = vsel %vm37, %v638, 0.0
    %v652 = vadd.f32 %v650, %v651
    %v653 = vsel %vm37, %v640, 0.0
    %v654 = vadd.f32 %v652, %v653
    %v655 = vlaneseq
    %v656 = vshrl.u32 %v655, 7
    %v657 = vsub.s32 3, %v656
    %v658 = vrot.slane %v36, %v657
    %659 = vrot.lane.b32.xlu0 %v24, 32
    %v660 = vpop.permute.xlu0 %659
    %661 = vrot.lane.b32.xlu0 %v25, 32
    %v662 = vpop.permute.xlu0 %661
    %663 = vrot.lane.b32.xlu0 %v26, 32
    %v664 = vpop.permute.xlu0 %663
    %665 = vrot.lane.b32.xlu0 %v27, 32
    %v666 = vpop.permute.xlu0 %665
    %v672 = vsel %vm37, %v647, 0
    %v675 = vsel %vm37, %v654, 0
    %677 = vmatprep.subr.mxu0 0.0
    %678 = vmatpush1.msra.mxu0 %v660
    %679 = vmatprep.subr.mxu0 0.0
    %680 = vmatpush1.msra.mxu0 %v662
    %681 = vmatprep.subr.mxu0 0.0
    %682 = vmatpush1.msra.mxu0 %v664
    %683 = vmatprep.subr.mxu0 0.0
    %684 = vmatpush1.msra.mxu0 %v666
    %685 = vmatprep.subr.mxu0 0.0
    %686 = vmatpush1.msra.mxu0 0.0
    %687 = vmatprep.subr.mxu0 0.0
    %688 = vmatpush1.msra.mxu0 0.0
    %689 = vmatprep.subr.mxu0 0.0
    %690 = vmatpush1.msra.mxu0 0.0
    %691 = vmatprep.subr.mxu0 0.0
    %692 = vmatpush1.msra.mxu0 0.0
    %693 = vmatprep.subr.mxu0 0.0
    %694 = vmatpush1.msra.mxu0 0.0
    %695 = vmatprep.subr.mxu0 0.0
    %696 = vmatpush1.msra.mxu0 0.0
    %697 = vmatprep.subr.mxu0 0.0
    %698 = vmatpush1.msra.mxu0 0.0
    %699 = vmatprep.subr.mxu0 0.0
    %700 = vmatpush1.msra.mxu0 0.0
    %701 = vmatprep.subr.mxu0 0.0
    %702 = vmatpush1.msra.mxu0 0.0
    %703 = vmatprep.subr.mxu0 0.0
    %704 = vmatpush1.msra.mxu0 0.0
    %705 = vmatprep.subr.mxu0 0.0
    %706 = vmatpush1.msra.mxu0 0.0
    %707 = vmatprep.subr.mxu0 0.0
    %708 = vmatpush1.msra.mxu0 0.0
    %709 = vmatprep.subr.mxu0 0.0
    %710 = vmatpush1.msra.mxu0 0.0
    %711 = vmatprep.subr.mxu0 0.0
    %712 = vmatpush1.msra.mxu0 0.0
    %713 = vmatprep.subr.mxu0 0.0
    %714 = vmatpush1.msra.mxu0 0.0
    %715 = vmatprep.subr.mxu0 0.0
    %716 = vmatpush1.msra.mxu0 0.0
    %717 = vmatprep.subr.mxu0 0.0
    %718 = vmatpush1.msra.mxu0 0.0
    %719 = vmatprep.subr.mxu0 0.0
    %720 = vmatpush1.msra.mxu0 0.0
    %721 = vmatprep.subr.mxu0 0.0
    %722 = vmatpush1.msra.mxu0 0.0
    %723 = vmatprep.subr.mxu0 0.0
    %724 = vmatpush1.msra.mxu0 0.0
    %725 = vmatprep.subr.mxu0 0.0
    %726 = vmatpush1.msra.mxu0 0.0
    %727 = vmatprep.subr.mxu0 0.0
    %728 = vmatpush1.msra.mxu0 0.0
    %729 = vmatprep.subr.mxu0 0.0
    %730 = vmatpush1.msra.mxu0 0.0
    %731 = vmatprep.subr.mxu0 0.0
    %732 = vmatpush1.msra.mxu0 0.0
    %733 = vmatprep.subr.mxu0 0.0
    %734 = vmatpush1.msra.mxu0 0.0
    %735 = vmatprep.subr.mxu0 0.0
    %736 = vmatpush1.msra.mxu0 0.0
    %737 = vmatprep.subr.mxu0 0.0
    %738 = vmatpush1.msra.mxu0 0.0
    %739 = vmatprep.subr.mxu0 0.0
    %740 = vmatpush1.msra.mxu0 0.0
    %741 = vmatprep.mubr.f32.mxu0 0.0
    %742 = vmatmul.mubr.f32.gmra.mrb[0].mxu0 %v672
    %v743 = vpop.f32.mrb[0].mxu0
    %v744 = vadd.f32 %v658, %v743
    %v745 = vpop.f32.mrb[0].mxu0
    %746 = vmatprep.mubr.f32.mxu0 0.0
    %747 = vmatmul.mubr.f32.gmra.mrb[0].mxu0 %v675
    %v748 = vpop.f32.mrb[0].mxu0
    %v749 = vadd.f32 %v658, %v748
    %v750 = vpop.f32.mrb[0].mxu0
    %751 = vdwg.mxu0
    %v752 = vadd.f32 %v18, %v744
    %v753 = vadd.f32 %v19, %v749
    %v754 = vsel %vm37, %v752, 0.0
    %755 = vadd.xlane.f32.xlu0 %v754
    %v756 = vpop.xlane.xlu0 %755
    %v757 = vsel %vm37, %v753, 0.0
    %758 = vadd.xlane.f32.xlu0 %v757
    %v759 = vpop.xlane.xlu0 %758
    %v760 = vrcp.pop 32.0
    %v761 = vmul.f32 %v756, %v760
    %v762 = vmul.f32 %v759, %v760
    %v763 = vsub.f32 %v752, %v761
    %v764 = vsub.f32 %v753, %v762
    %v765 = vmul.f32 %v763, %v763
    %v766 = vmul.f32 %v764, %v764
    %v767 = vsel %vm37, %v765, 0.0
    %768 = vadd.xlane.f32.xlu0 %v767
    %v769 = vpop.xlane.xlu0 %768
    %v770 = vsel %vm37, %v766, 0.0
    %771 = vadd.xlane.f32.xlu0 %v770
    %v772 = vpop.xlane.xlu0 %771
    %v773 = vmul.f32 %v769, %v760
    %v774 = vmul.f32 %v772, %v760
    %v775 = vadd.f32 %v773, 1e-05
    %v776 = vadd.f32 %v774, 1e-05
    %v777 = vrsqrt.pop %v775
    %v778 = vrsqrt.pop %v776
    %v779 = vmul.f32 %v763, %v777
    %v780 = vmul.f32 %v764, %v778
    %v781 = vlaneseq
    %v782 = vshrl.u32 %v781, 7
    %v783 = vsub.s32 4, %v782
    %v784 = vrot.slane %v36, %v783
    %v785 = vmul.f32 %v779, %v784
    %v786 = vmul.f32 %v780, %v784
    %v787 = vlaneseq
    %v788 = vshrl.u32 %v787, 7
    %v789 = vsub.s32 5, %v788
    %v790 = vrot.slane %v36, %v789
    %v791 = vadd.f32 %v785, %v790
    %v792 = vadd.f32 %v786, %v790
    %793 = vst.msk [vmem:[#allocation2] sm:$0xff] %vm37, %v791
    %794 = vst.msk [vmem:[#allocation2 + $0x8] sm:$0xff] %vm37, %v792
    // Predicated region
    $region18: #{self_attention_layer.1} parent=1 // pred_check
      _
    $region19: #{self_attention_layer.1} parent=1 // pred_check_branch
      %796 = sbr.rel (0) target = $region21
    $region20: #{self_attention_layer.1} parent=1 // pred_region
      %s798 = ssub.s32 256, 256
      %799 = vsyncadd [#allocation3], %s798
      %s800 = sshll.u32 [#allocation2], 4
      %s801 = int_to_ptr.vmem [resolvable:$true] %s800
      %806 = dma.vmem_to_hbm [thread:$0]  %s801, 256, %s4, [#allocation3], 128, 128, 8
    $region21: #{self_attention_layer.1} parent=1 // pred_fallthru
      _
    // Predicated region
    $region22: #{self_attention_layer.1} parent=1 // pred_check
      _
    $region23: #{self_attention_layer.1} parent=1 // pred_check_branch
      %808 = sbr.rel (0) target = $region25
    $region24: #{self_attention_layer.1} parent=1 // pred_region
      %809 = dma.done [#allocation3], 256
    $region25: #{self_attention_layer.1} parent=1 // pred_fallthru
      _
    %810 = vsyncpa [#allocation3], 1

</llo_original>
